<compile_context>
chip_gen: v5e
topology: v5e:2x2
jax: 0.10.0
libtpu: 0.0.40
codegen_flags: <defaults>
</compile_context>

<pallas_src>
import functools

import jax
import jax.numpy as jnp
from jax import lax
from jax.experimental import pallas as pl
from jax.experimental.pallas import tpu as pltpu


def _round_up(x, m):
    return (x + m - 1) // m * m


# -----------------------------------------------------------------------------
# Kernel
# -----------------------------------------------------------------------------
# Packed parameter slab (f32, shape (16, hp), hp = round_up(max(h0,h1), 128)):
#   row 0: b1     row 1: gamma1   row 2: beta1
#   row 3: b2     row 4: gamma2   row 5: beta2
#   row 6: bout (lane 0)          row 7: zeros
#   rows 8..15: output-layer weight row `wout` in row 8, zeros elsewhere
#   (rows 8..15 form the 8-sublane LHS of the final lane-dense MXU projection).
def _critic_kernel(xin_ref, w1t_ref, w2ht_ref, w2at_ref, p_ref, out_ref,
                   *, h0, h1, eps):
    xin = xin_ref[...]                       # (tile_b, obs_sp+act_sp), bf16/f32
    p = p_ref[...]                           # (16, hp) f32 — single hoisted load

    # ---- layer 1: linear1(obs) -> LayerNorm -> relu --------------------------
    # W1^T has zero rows over the act part of the merged stream, so this equals
    # obs @ W1^T exactly.  Accumulation in f32.
    z1 = jnp.dot(xin, w1t_ref[...], preferred_element_type=jnp.float32)
    z1 = z1 + p[0:1, :h0]
    mu1 = jnp.mean(z1, axis=-1, keepdims=True)
    d1 = z1 - mu1
    var1 = jnp.mean(d1 * d1, axis=-1, keepdims=True)
    z1 = d1 * lax.rsqrt(var1 + eps)
    z1 = z1 * p[1:2, :h0] + p[2:3, :h0]
    z1 = jnp.maximum(z1, 0.0)

    # ---- layer 2: linear2(cat(z1, act)) -> LayerNorm -> relu ------------------
    # cat(z1, act) @ W2^T == z1 @ W2[:, :h0]^T + act @ W2[:, h0:]^T.
    # The act term re-uses the merged stream against a W2a^T whose obs rows are
    # zero (exact).  z1 is cast to the weight dtype (bf16 by default), products
    # accumulate in f32.
    z2 = (jnp.dot(z1.astype(w2ht_ref.dtype), w2ht_ref[...],
                  preferred_element_type=jnp.float32)
          + jnp.dot(xin, w2at_ref[...], preferred_element_type=jnp.float32)
          + p[3:4, :h1])
    mu2 = jnp.mean(z2, axis=-1, keepdims=True)
    d2 = z2 - mu2
    var2 = jnp.mean(d2 * d2, axis=-1, keepdims=True)
    z2 = d2 * lax.rsqrt(var2 + eps)
    z2 = z2 * p[4:5, :h1] + p[5:6, :h1]
    z2 = jnp.maximum(z2, 0.0)

    # ---- output layer (out_features=1), lane-dense ----------------------------
    # Contract over h1 with the batch landing on the lane axis:
    #   (8, h1) x (tile_b, h1) -> (8, tile_b); row 0 holds the result.
    # This replaces the (tile_b, 1) column result (masked 1-lane stores) with a
    # dense (1, tile_b) row store.
    proj = lax.dot_general(p[8:16, :h1], z2, (((1,), (1,)), ((), ())),
                           preferred_element_type=jnp.float32)
    out_ref[...] = proj[0:1, :] + p[6:7, 0:1]


# -----------------------------------------------------------------------------
# One-time parameter repacking (hoisted out of the per-call path)
# -----------------------------------------------------------------------------
def prepare_params(params, *, compute_dtype=jnp.bfloat16):
    """Repack ContinuousCritic parameters for the kernel.

    Weight slabs are stored in `compute_dtype` (bf16 default: the kernel is
    HBM-bound and all dots accumulate in f32); the LN/bias/output slab stays
    f32.  Pass compute_dtype=jnp.float32 for bit-faithful f32 semantics.
    """
    w1 = jnp.asarray(params["w1"], jnp.float32)            # (h0, obs_sp)
    w2 = jnp.asarray(params["w2"], jnp.float32)            # (h1, h0+act_sp)
    wout = jnp.asarray(params["wout"], jnp.float32).reshape(-1)   # (h1,)
    h0, obs_sp = w1.shape
    h1 = w2.shape[0]
    act_sp = w2.shape[1] - h0
    in_dim = obs_sp + act_sp
    hp = max(128, _round_up(max(h0, h1), 128))   # full 128-lane slab rows

    def row(v):
        v = jnp.asarray(v, jnp.float32).reshape(-1)
        return jnp.pad(v, (0, hp - v.shape[0]))

    zrow = jnp.zeros((hp,), jnp.float32)
    pslab = jnp.stack([
        row(params["b1"]), row(params["g1"]), row(params["beta1"]),
        row(params["b2"]), row(params["g2"]), row(params["beta2"]),
        row(params["bout"]), zrow,
        row(wout), zrow, zrow, zrow, zrow, zrow, zrow, zrow,
    ], axis=0)                                   # (16, hp): two (8,128) f32 tiles

    # Zero-padded transposed weights so both dots consume the merged obs++act
    # stream with no in-kernel slicing (zero rows contribute exactly 0).
    w1t = jnp.zeros((in_dim, h0), jnp.float32).at[:obs_sp].set(w1.T)
    w2t = w2.T                                   # (h0+act_sp, h1)
    w2ht = w2t[:h0]
    w2at = jnp.zeros((in_dim, h1), jnp.float32).at[obs_sp:].set(w2t[h0:])

    cdt = compute_dtype
    return dict(w1t=w1t.astype(cdt), w2ht=w2ht.astype(cdt),
                w2at=w2at.astype(cdt), pslab=pslab,
                h0=h0, h1=h1, obs_sp=obs_sp, act_sp=act_sp, hp=hp)


def _pick_tile_b(b):
    # HBM/overhead-bound kernel -> big batch tiles.  <=1024 rows: one grid step.
    # Larger: largest 128-aligned tile <= 2048 with >= 2 steps (both v7x TCs
    # get work) and minimal padding.  VMEM at tile_b=2048 is ~1.5 MiB, well
    # under the 16 MiB (v5e) / 32 MiB (v6e/v7x) scoped-VMEM defaults.
    if b <= 1024:
        return _round_up(max(b, 1), 8)
    n_tiles = max(2, -(-b // 2048))
    return min(2048, _round_up(-(-b // n_tiles), 128))


# -----------------------------------------------------------------------------
# Forward wrapper
# -----------------------------------------------------------------------------
def continuous_critic_forward(obs, act, prep, *, tile_b=None, eps=1e-5):
    obs = jnp.asarray(obs)
    act = jnp.asarray(act)
    b = obs.shape[0]
    obs_sp, act_sp = prep["obs_sp"], prep["act_sp"]
    h0, h1, hp = prep["h0"], prep["h1"], prep["hp"]
    assert obs.shape == (b, obs_sp) and act.shape == (b, act_sp)
    in_dim = obs_sp + act_sp
    cdt = prep["w1t"].dtype

    if tile_b is None:
        tile_b = _pick_tile_b(b)
    b_pad = _round_up(b, tile_b)
    n_tiles = b_pad // tile_b

    # Single merged HBM activation stream in the compute dtype (bf16 halves the
    # dominant HBM read; ideally the producer already emits bf16).  Padded rows
    # are zeros; they stay finite through LayerNorm thanks to eps and are
    # sliced off below.
    xin = jnp.concatenate([obs, act], axis=-1).astype(cdt)
    if b_pad != b:
        xin = jnp.pad(xin, ((0, b_pad - b), (0, 0)))

    kernel = functools.partial(_critic_kernel, h0=h0, h1=h1, eps=eps)

    out = pl.pallas_call(
        kernel,
        out_shape=jax.ShapeDtypeStruct((1, b_pad), jnp.float32),
        grid_spec=pltpu.PrefetchScalarGridSpec(
            num_scalar_prefetch=0,
            grid=(n_tiles,),
            in_specs=[
                pl.BlockSpec((tile_b, in_dim), lambda i: (i, 0)),  # merged obs/act
                pl.BlockSpec((in_dim, h0), lambda i: (0, 0)),      # W1^T (resident)
                pl.BlockSpec((h0, h1), lambda i: (0, 0)),          # W2^T hidden rows
                pl.BlockSpec((in_dim, h1), lambda i: (0, 0)),      # W2^T action rows
                pl.BlockSpec((16, hp), lambda i: (0, 0)),          # LN/bias/out slab
            ],
            # Lane-dense: each step writes a contiguous tile_b-lane row chunk.
            out_specs=pl.BlockSpec((1, tile_b), lambda i: (0, i)),
        ),
        compiler_params=pltpu.CompilerParams(
            dimension_semantics=("parallel",),   # megacore-shard batch on v7x
        ),
    )(xin, prep["w1t"], prep["w2ht"], prep["w2at"], prep["pslab"])

    return out[0, :b, None]                      # (b, 1)


# -----------------------------------------------------------------------------
# Pure-JAX references
# -----------------------------------------------------------------------------
def _reference(obs, act, params, eps=1e-5):
    """Exact mirror of the PyTorch forward (f32)."""
    def ln(x, g, b):
        mu = x.mean(-1, keepdims=True)
        var = ((x - mu) ** 2).mean(-1, keepdims=True)
        return (x - mu) / jnp.sqrt(var + eps) * g + b

    x = obs @ params["w1"].T + params["b1"]
    x = jnp.maximum(ln(x, params["g1"], params["beta1"]), 0.0)
    x = jnp.concatenate([x, act], axis=-1)
    x = x @ params["w2"].T + params["b2"]
    x = jnp.maximum(ln(x, params["g2"], params["beta2"]), 0.0)
    return x @ params["wout"].T + params["bout"]


def _reference_kernel_numerics(obs, act, params, compute_dtype, eps=1e-5):
    """f32 math on compute_dtype-rounded matmul operands — mirrors the kernel's
    bf16-storage / f32-accumulate numerics for a tight comparison."""
    c = lambda v: jnp.asarray(v, jnp.float32).astype(compute_dtype).astype(jnp.float32)

    def ln(x, g, b):
        mu = x.mean(-1, keepdims=True)
        var = ((x - mu) ** 2).mean(-1, keepdims=True)
        return (x - mu) * lax.rsqrt(var + eps) * g + b

    h0 = params["w1"].shape[0]
    x = c(obs) @ c(params["w1"]).T + params["b1"]
    x = jnp.maximum(ln(x, params["g1"], params["beta1"]), 0.0)
    x = (c(x) @ c(params["w2"][:, :h0]).T
         + c(act) @ c(params["w2"][:, h0:]).T + params["b2"])
    x = jnp.maximum(ln(x, params["g2"], params["beta2"]), 0.0)
    return x @ params["wout"].T + params["bout"]


def _init_params(key, obs_sp, act_sp, hidden=(64, 64)):
    h0, h1 = hidden
    ks = jax.random.split(key, 10)

    def lin(kw, kb, out_f, in_f, w_lim=None):
        # hidden_init() uses weight.size(0)=out_features for the weight bound;
        # PyTorch's default bias bound is 1/sqrt(in_features).
        wb = (1.0 / jnp.sqrt(jnp.float32(out_f))) if w_lim is None else w_lim
        bb = 1.0 / jnp.sqrt(jnp.float32(in_f))
        w = jax.random.uniform(kw, (out_f, in_f), jnp.float32, -wb, wb)
        b = jax.random.uniform(kb, (out_f,), jnp.float32, -bb, bb)
        return w, b

    w1, b1 = lin(ks[0], ks[1], h0, obs_sp)
    w2, b2 = lin(ks[2], ks[3], h1, h0 + act_sp)
    wout, bout = lin(ks[4], ks[5], 1, h1, w_lim=0.003)
    g1 = 1.0 + 0.1 * jax.random.normal(ks[6], (h0,), jnp.float32)
    beta1 = 0.1 * jax.random.normal(ks[7], (h0,), jnp.float32)
    g2 = 1.0 + 0.1 * jax.random.normal(ks[8], (h1,), jnp.float32)
    beta2 = 0.1 * jax.random.normal(ks[9], (h1,), jnp.float32)
    return dict(w1=w1, b1=b1, w2=w2, b2=b2, wout=wout, bout=bout,
                g1=g1, beta1=beta1, g2=g2, beta2=beta2)


if __name__ == "__main__":
    OBS_SP, ACT_SP, HIDDEN = 16, 4, (64, 64)

    key = jax.random.PRNGKey(0)
    k_obs, k_act, k_par, k_obs2, k_act2 = jax.random.split(key, 5)
    params = _init_params(k_par, OBS_SP, ACT_SP, HIDDEN)

    # --- small single-tile batch (primary check) -----------------------------
    B = 8
    obs = jax.random.normal(k_obs, (B, OBS_SP), jnp.float32)
    act = jax.random.normal(k_act, (B, ACT_SP), jnp.float32)
    ref = _reference(obs, act, params)

    # f32 path: tight agreement with the PyTorch-module numerics.
    prep_f32 = prepare_params(params, compute_dtype=jnp.float32)
    out_f32 = jax.block_until_ready(continuous_critic_forward(obs, act, prep_f32))
    assert out_f32.shape == (B, 1)
    err = float(jnp.max(jnp.abs(out_f32 - ref)))
    assert err < 1e-3, f"f32 path mismatch: {err}"

    # bf16 path (perf default): bf16 HBM traffic, f32 accumulation.
    prep = prepare_params(params)
    out_bf = jax.block_until_ready(continuous_critic_forward(obs, act, prep))
    ref_bf = _reference_kernel_numerics(obs, act, params, jnp.bfloat16)
    err = float(jnp.max(jnp.abs(out_bf - ref_bf)))
    assert err < 5e-3, f"bf16 path vs bf16-emulating reference mismatch: {err}"
    err = float(jnp.max(jnp.abs(out_bf - ref)))
    assert err < 5e-2, f"bf16 path vs f32 reference mismatch: {err}"

    # --- multi-tile grid: exercises batch tiling, padded rows and the
    #     lane-blocked output store (3 grid steps of tile_b=128 over B=272). ---
    B2 = 272
    obs2 = jax.random.normal(k_obs2, (B2, OBS_SP), jnp.float32)
    act2 = jax.random.normal(k_act2, (B2, ACT_SP), jnp.float32)
    out2 = jax.block_until_ready(
        continuous_critic_forward(obs2, act2, prep, tile_b=128))
    assert out2.shape == (B2, 1)
    ref2 = _reference_kernel_numerics(obs2, act2, params, jnp.bfloat16)
    err = float(jnp.max(jnp.abs(out2 - ref2)))
    assert err < 5e-3, f"multi-tile mismatch: {err}"

    print("KERNEL_OK")
</pallas_src>

<mosaic_0001>
module attributes {stable_mosaic.version = 11 : i64} {
  func.func @_critic_kernel(%arg0: i32, %arg1: memref<8x20xf32, #tpu.memory_space<vmem>>, %arg2: memref<20x64xf32, #tpu.memory_space<vmem>>, %arg3: memref<64x64xf32, #tpu.memory_space<vmem>>, %arg4: memref<20x64xf32, #tpu.memory_space<vmem>>, %arg5: memref<16x128xf32, #tpu.memory_space<vmem>>, %arg6: memref<1x8xf32, #tpu.memory_space<vmem>>) attributes {dimension_semantics = [#tpu.dimension_semantics<parallel>], iteration_bounds = array<i64: 1>, scalar_prefetch = 0 : i64, scratch_operands = 0 : i64, tpu.core_type = #tpu.core_type<tc>, window_params = [{transform_indices = @transform_0, window_bounds = array<i64: 8, 20>}, {pipeline_mode = #tpu.pipeline_mode<synchronous>, transform_indices = @transform_1, window_bounds = array<i64: 20, 64>}, {pipeline_mode = #tpu.pipeline_mode<synchronous>, transform_indices = @transform_2, window_bounds = array<i64: 64, 64>}, {pipeline_mode = #tpu.pipeline_mode<synchronous>, transform_indices = @transform_3, window_bounds = array<i64: 20, 64>}, {pipeline_mode = #tpu.pipeline_mode<synchronous>, transform_indices = @transform_4, window_bounds = array<i64: 16, 128>}, {transform_indices = @transform_5, window_bounds = array<i64: 1, 8>}]} {
    %c0 = arith.constant 0 : index
    %c0_0 = arith.constant 0 : index
    %0 = vector.load %arg1[%c0, %c0_0] : memref<8x20xf32, #tpu.memory_space<vmem>>, vector<8x20xf32>
    %c0_1 = arith.constant 0 : index
    %c0_2 = arith.constant 0 : index
    %1 = vector.load %arg5[%c0_1, %c0_2] : memref<16x128xf32, #tpu.memory_space<vmem>>, vector<16x128xf32>
    %c0_3 = arith.constant 0 : index
    %c0_4 = arith.constant 0 : index
    %2 = vector.load %arg2[%c0_3, %c0_4] : memref<20x64xf32, #tpu.memory_space<vmem>>, vector<20x64xf32>
    %cst = arith.constant dense<0.000000e+00> : vector<8x64xf32>
    %3 = tpu.matmul %0, %2, %cst {dimension_numbers = #tpu.dot_dimension_numbers<[1], [0], [0], [1], [0, 0, 1, 1], [], []>} : vector<8x20xf32>, vector<20x64xf32>, vector<8x64xf32> -> vector<8x64xf32>
    %4 = vector.extract_strided_slice %1 {offsets = [0, 0], sizes = [1, 64], strides = [1, 1]} : vector<16x128xf32> to vector<1x64xf32>
    %5 = vector.broadcast %4 : vector<1x64xf32> to vector<8x64xf32>
    %6 = arith.addf %3, %5 : vector<8x64xf32>
    %cst_5 = arith.constant dense<0.000000e+00> : vector<8xf32>
    %7 = vector.multi_reduction <add>, %6, %cst_5 [1] : vector<8x64xf32> to vector<8xf32>
    %8 = vector.shape_cast %7 : vector<8xf32> to vector<8x1xf32>
    %cst_6 = arith.constant 6.400000e+01 : f32
    %9 = vector.broadcast %cst_6 : f32 to vector<8x1xf32>
    %10 = arith.divf %8, %9 : vector<8x1xf32>
    %11 = vector.broadcast %10 : vector<8x1xf32> to vector<8x64xf32>
    %12 = arith.subf %6, %11 : vector<8x64xf32>
    %13 = arith.mulf %12, %12 : vector<8x64xf32>
    %cst_7 = arith.constant dense<0.000000e+00> : vector<8xf32>
    %14 = vector.multi_reduction <add>, %13, %cst_7 [1] : vector<8x64xf32> to vector<8xf32>
    %15 = vector.shape_cast %14 : vector<8xf32> to vector<8x1xf32>
    %cst_8 = arith.constant 6.400000e+01 : f32
    %16 = vector.broadcast %cst_8 : f32 to vector<8x1xf32>
    %17 = arith.divf %15, %16 : vector<8x1xf32>
    %cst_9 = arith.constant 9.99999974E-6 : f32
    %18 = vector.broadcast %cst_9 : f32 to vector<8x1xf32>
    %19 = arith.addf %17, %18 : vector<8x1xf32>
    %20 = math.rsqrt %19 : vector<8x1xf32>
    %21 = vector.broadcast %20 : vector<8x1xf32> to vector<8x64xf32>
    %22 = arith.mulf %12, %21 : vector<8x64xf32>
    %23 = vector.extract_strided_slice %1 {offsets = [1, 0], sizes = [1, 64], strides = [1, 1]} : vector<16x128xf32> to vector<1x64xf32>
    %24 = vector.broadcast %23 : vector<1x64xf32> to vector<8x64xf32>
    %25 = arith.mulf %22, %24 : vector<8x64xf32>
    %26 = vector.extract_strided_slice %1 {offsets = [2, 0], sizes = [1, 64], strides = [1, 1]} : vector<16x128xf32> to vector<1x64xf32>
    %27 = vector.broadcast %26 : vector<1x64xf32> to vector<8x64xf32>
    %28 = arith.addf %25, %27 : vector<8x64xf32>
    %cst_10 = arith.constant 0.000000e+00 : f32
    %29 = vector.broadcast %cst_10 : f32 to vector<8x64xf32>
    %30 = arith.maximumf %28, %29 : vector<8x64xf32>
    %c0_11 = arith.constant 0 : index
    %c0_12 = arith.constant 0 : index
    %31 = vector.load %arg3[%c0_11, %c0_12] : memref<64x64xf32, #tpu.memory_space<vmem>>, vector<64x64xf32>
    %cst_13 = arith.constant dense<0.000000e+00> : vector<8x64xf32>
    %32 = tpu.matmul %30, %31, %cst_13 {dimension_numbers = #tpu.dot_dimension_numbers<[1], [0], [0], [1], [0, 0, 1, 1], [], []>} : vector<8x64xf32>, vector<64x64xf32>, vector<8x64xf32> -> vector<8x64xf32>
    %c0_14 = arith.constant 0 : index
    %c0_15 = arith.constant 0 : index
    %33 = vector.load %arg4[%c0_14, %c0_15] : memref<20x64xf32, #tpu.memory_space<vmem>>, vector<20x64xf32>
    %cst_16 = arith.constant dense<0.000000e+00> : vector<8x64xf32>
    %34 = tpu.matmul %0, %33, %cst_16 {dimension_numbers = #tpu.dot_dimension_numbers<[1], [0], [0], [1], [0, 0, 1, 1], [], []>} : vector<8x20xf32>, vector<20x64xf32>, vector<8x64xf32> -> vector<8x64xf32>
    %35 = arith.addf %32, %34 : vector<8x64xf32>
    %36 = vector.extract_strided_slice %1 {offsets = [3, 0], sizes = [1, 64], strides = [1, 1]} : vector<16x128xf32> to vector<1x64xf32>
    %37 = vector.broadcast %36 : vector<1x64xf32> to vector<8x64xf32>
    %38 = arith.addf %35, %37 : vector<8x64xf32>
    %cst_17 = arith.constant dense<0.000000e+00> : vector<8xf32>
    %39 = vector.multi_reduction <add>, %38, %cst_17 [1] : vector<8x64xf32> to vector<8xf32>
    %40 = vector.shape_cast %39 : vector<8xf32> to vector<8x1xf32>
    %cst_18 = arith.constant 6.400000e+01 : f32
    %41 = vector.broadcast %cst_18 : f32 to vector<8x1xf32>
    %42 = arith.divf %40, %41 : vector<8x1xf32>
    %43 = vector.broadcast %42 : vector<8x1xf32> to vector<8x64xf32>
    %44 = arith.subf %38, %43 : vector<8x64xf32>
    %45 = arith.mulf %44, %44 : vector<8x64xf32>
    %cst_19 = arith.constant dense<0.000000e+00> : vector<8xf32>
    %46 = vector.multi_reduction <add>, %45, %cst_19 [1] : vector<8x64xf32> to vector<8xf32>
    %47 = vector.shape_cast %46 : vector<8xf32> to vector<8x1xf32>
    %cst_20 = arith.constant 6.400000e+01 : f32
    %48 = vector.broadcast %cst_20 : f32 to vector<8x1xf32>
    %49 = arith.divf %47, %48 : vector<8x1xf32>
    %cst_21 = arith.constant 9.99999974E-6 : f32
    %50 = vector.broadcast %cst_21 : f32 to vector<8x1xf32>
    %51 = arith.addf %49, %50 : vector<8x1xf32>
    %52 = math.rsqrt %51 : vector<8x1xf32>
    %53 = vector.broadcast %52 : vector<8x1xf32> to vector<8x64xf32>
    %54 = arith.mulf %44, %53 : vector<8x64xf32>
    %55 = vector.extract_strided_slice %1 {offsets = [4, 0], sizes = [1, 64], strides = [1, 1]} : vector<16x128xf32> to vector<1x64xf32>
    %56 = vector.broadcast %55 : vector<1x64xf32> to vector<8x64xf32>
    %57 = arith.mulf %54, %56 : vector<8x64xf32>
    %58 = vector.extract_strided_slice %1 {offsets = [5, 0], sizes = [1, 64], strides = [1, 1]} : vector<16x128xf32> to vector<1x64xf32>
    %59 = vector.broadcast %58 : vector<1x64xf32> to vector<8x64xf32>
    %60 = arith.addf %57, %59 : vector<8x64xf32>
    %cst_22 = arith.constant 0.000000e+00 : f32
    %61 = vector.broadcast %cst_22 : f32 to vector<8x64xf32>
    %62 = arith.maximumf %60, %61 : vector<8x64xf32>
    %63 = vector.extract_strided_slice %1 {offsets = [8, 0], sizes = [8, 64], strides = [1, 1]} : vector<16x128xf32> to vector<8x64xf32>
    %cst_23 = arith.constant dense<0.000000e+00> : vector<8x8xf32>
    %64 = tpu.matmul %63, %62, %cst_23 {dimension_numbers = #tpu.dot_dimension_numbers<[1], [1], [0], [0], [0, 0, 1, 0], [], []>} : vector<8x64xf32>, vector<8x64xf32>, vector<8x8xf32> -> vector<8x8xf32>
    %65 = vector.extract_strided_slice %64 {offsets = [0, 0], sizes = [1, 8], strides = [1, 1]} : vector<8x8xf32> to vector<1x8xf32>
    %66 = vector.extract_strided_slice %1 {offsets = [6, 0], sizes = [1, 1], strides = [1, 1]} : vector<16x128xf32> to vector<1x1xf32>
    %67 = vector.broadcast %66 : vector<1x1xf32> to vector<1x8xf32>
    %68 = arith.addf %65, %67 : vector<1x8xf32>
    %c0_24 = arith.constant 0 : index
    %c0_25 = arith.constant 0 : index
    %69 = vector.load %arg6[%c0_24, %c0_25] : memref<1x8xf32, #tpu.memory_space<vmem>>, vector<1x8xf32>
    tpu.vector_store %arg6[%c0_24, %c0_25], %68 {strides = array<i32>} : memref<1x8xf32, #tpu.memory_space<vmem>>, vector<1x8xf32>,
    return
  }
  func.func @transform_0(%arg0: i32) -> (i32, i32) {
    %c0_i32 = arith.constant 0 : i32
    %c0_i32_0 = arith.constant 0 : i32
    return %arg0, %c0_i32 : i32, i32
  }
  func.func @transform_1(%arg0: i32) -> (i32, i32) {
    %c0_i32 = arith.constant 0 : i32
    %c0_i32_0 = arith.constant 0 : i32
    %c0_i32_1 = arith.constant 0 : i32
    return %c0_i32, %c0_i32_0 : i32, i32
  }
  func.func @transform_2(%arg0: i32) -> (i32, i32) {
    %c0_i32 = arith.constant 0 : i32
    %c0_i32_0 = arith.constant 0 : i32
    %c0_i32_1 = arith.constant 0 : i32
    return %c0_i32, %c0_i32_0 : i32, i32
  }
  func.func @transform_3(%arg0: i32) -> (i32, i32) {
    %c0_i32 = arith.constant 0 : i32
    %c0_i32_0 = arith.constant 0 : i32
    %c0_i32_1 = arith.constant 0 : i32
    return %c0_i32, %c0_i32_0 : i32, i32
  }
  func.func @transform_4(%arg0: i32) -> (i32, i32) {
    %c0_i32 = arith.constant 0 : i32
    %c0_i32_0 = arith.constant 0 : i32
    %c0_i32_1 = arith.constant 0 : i32
    return %c0_i32, %c0_i32_0 : i32, i32
  }
  func.func @transform_5(%arg0: i32) -> (i32, i32) {
    %c0_i32 = arith.constant 0 : i32
    %c0_i32_0 = arith.constant 0 : i32
    return %c0_i32, %arg0 : i32, i32
  }
}

</mosaic_0001>

<llo_original>
// kernel: tpu_custom_call.1
$region0: #{tpu_custom_call.1}
  #allocation0 [shape = 'u32[]', space=smem, size = 0x4, offset = 0x4, fixed_abs, tag = 'smem constant byte address 0x4 - core index']
  #allocation1 [shape = 'u32[72,128]{1,0:T(1,128)}', space=vmem, size = 0x9000, scoped, tag = 'internal scratch']
  %s0 = inlined_call_operand.hbm [shape: f32[8,20], index: 0, kind: input, shape index: {}]
  %s1 = inlined_call_operand.hbm [shape: f32[20,64], index: 1, kind: input, shape index: {}]
  %s2 = inlined_call_operand.hbm [shape: f32[64,64], index: 2, kind: input, shape index: {}]
  %s3 = inlined_call_operand.hbm [shape: f32[20,64], index: 3, kind: input, shape index: {}]
  %s4 = inlined_call_operand.hbm [shape: f32[16,128], index: 4, kind: input, shape index: {}]
  %s5 = inlined_call_operand.hbm [shape: f32[1,8], index: 5, kind: output, shape index: {}]
  %s6 = sld [smem:[#allocation0]]
  $region50: #{tpu_custom_call.1} parent=0
    _
  %s8 = ssub.s32 1, %s6
  %s9 = scalar_select 0, %s8, %s6
  $region1: #{tpu_custom_call.1} parent=0
    #allocation2 [shape = 'u8[4096]{0}', space=vmem, size = 0x1000, scoped, tag = 'input window, operand 0, single buffered']
    #allocation3 [shape = 's32[1]{0}', space=sflag, size = 0x4, scoped, tag = 'scoped memory for tpu_custom_call.1']
    #allocation4 [shape = 's32[1]{0}', space=sflag, size = 0x4, scoped, tag = 'scoped memory for tpu_custom_call.1']
    #allocation5 [shape = 'u8[12288]{0}', space=vmem, size = 0x3000, scoped, tag = 'input window, operand 1, single buffered']
    #allocation6 [shape = 's32[1]{0}', space=sflag, size = 0x4, scoped, tag = 'scoped memory for tpu_custom_call.1']
    #allocation7 [shape = 'u8[32768]{0}', space=vmem, size = 0x8000, scoped, tag = 'input window, operand 2, single buffered']
    #allocation8 [shape = 'u8[12288]{0}', space=vmem, size = 0x3000, scoped, tag = 'input window, operand 3, single buffered']
    #allocation9 [shape = 's32[1]{0}', space=sflag, size = 0x4, scoped, tag = 'scoped memory for tpu_custom_call.1']
    #allocation10 [shape = 'u8[8192]{0}', space=vmem, size = 0x2000, scoped, tag = 'input window, operand 4, single buffered']
    #allocation11 [shape = 'u8[512]{0}', space=vmem, size = 0x400, scoped, tag = 'output window, operand 0, single buffered']
    %10 = vsyncpa [#allocation3], 0
    %11 = vsyncpa [#allocation6], 0
    %12 = vsyncpa [#allocation9], 0
    %13 = vsyncpa [#allocation4], 0
    // Predicated region
    $region2: #{tpu_custom_call.1} parent=1 // pred_check
      _
    $region3: #{tpu_custom_call.1} parent=1 // pred_check_branch
      %15 = sbr.rel (0) target = $region5
    $region4: #{tpu_custom_call.1} parent=1 // pred_region
      %17 = vsyncadd [#allocation3], 0
      %s19 = sshll.u32 %s0, 4
      %s20 = int_to_ptr.hbm [resolvable:$true] %s19
      %s21 = sshll.u32 [#allocation2], 4
      %s22 = int_to_ptr.vmem [resolvable:$true] %s21
      %24 = dma.hbm_to_vmem [thread:$0]  %s20, 128, %s22, [#allocation3]
    $region5: #{tpu_custom_call.1} parent=1 // pred_fallthru
      _
    // Predicated region
    $region6: #{tpu_custom_call.1} parent=1 // pred_check
      _
    $region7: #{tpu_custom_call.1} parent=1 // pred_check_branch
      %26 = sbr.rel (0) target = $region9
    $region8: #{tpu_custom_call.1} parent=1 // pred_region
      %28 = vsyncadd [#allocation6], 0
      %s29 = sshll.u32 %s1, 4
      %s30 = int_to_ptr.hbm [resolvable:$true] %s29
      %s31 = sshll.u32 [#allocation5], 4
      %s32 = int_to_ptr.vmem [resolvable:$true] %s31
      %37 = dma.hbm_to_vmem [thread:$0]  %s30, 384, %s32, [#allocation6], 128, 128, 8
    $region9: #{tpu_custom_call.1} parent=1 // pred_fallthru
      _
    // Predicated region
    $region10: #{tpu_custom_call.1} parent=1 // pred_check
      _
    $region11: #{tpu_custom_call.1} parent=1 // pred_check_branch
      %39 = sbr.rel (0) target = $region13
    $region12: #{tpu_custom_call.1} parent=1 // pred_region
      %41 = vsyncadd [#allocation6], 0
      %s42 = sshll.u32 %s2, 4
      %s43 = int_to_ptr.hbm [resolvable:$true] %s42
      %s44 = sshll.u32 [#allocation7], 4
      %s45 = int_to_ptr.vmem [resolvable:$true] %s44
      %50 = dma.hbm_to_vmem [thread:$0]  %s43, 1024, %s45, [#allocation6], 128, 128, 8
    $region13: #{tpu_custom_call.1} parent=1 // pred_fallthru
      _
    // Predicated region
    $region14: #{tpu_custom_call.1} parent=1 // pred_check
      _
    $region15: #{tpu_custom_call.1} parent=1 // pred_check_branch
      %52 = sbr.rel (0) target = $region17
    $region16: #{tpu_custom_call.1} parent=1 // pred_region
      %54 = vsyncadd [#allocation9], 0
      %s55 = sshll.u32 %s3, 4
      %s56 = int_to_ptr.hbm [resolvable:$true] %s55
      %s57 = sshll.u32 [#allocation8], 4
      %s58 = int_to_ptr.vmem [resolvable:$true] %s57
      %63 = dma.hbm_to_vmem [thread:$0]  %s56, 384, %s58, [#allocation9], 128, 128, 8
    $region17: #{tpu_custom_call.1} parent=1 // pred_fallthru
      _
    // Predicated region
    $region18: #{tpu_custom_call.1} parent=1 // pred_check
      _
    $region19: #{tpu_custom_call.1} parent=1 // pred_check_branch
      %65 = sbr.rel (0) target = $region21
    $region20: #{tpu_custom_call.1} parent=1 // pred_region
      %67 = vsyncadd [#allocation9], 0
      %s68 = sshll.u32 %s4, 4
      %s69 = int_to_ptr.hbm [resolvable:$true] %s68
      %s70 = sshll.u32 [#allocation10], 4
      %s71 = int_to_ptr.vmem [resolvable:$true] %s70
      %76 = dma.hbm_to_vmem [thread:$0]  %s69, 256, %s71, [#allocation9], 128, 128, 8
    $region21: #{tpu_custom_call.1} parent=1 // pred_fallthru
      _
    // Predicated region
    $region22: #{tpu_custom_call.1} parent=1 // pred_check
      _
    $region23: #{tpu_custom_call.1} parent=1 // pred_check_branch
      %78 = sbr.rel (0) target = $region25
    $region24: #{tpu_custom_call.1} parent=1 // pred_region
      %80 = dma.done [#allocation3], 128
    $region25: #{tpu_custom_call.1} parent=1 // pred_fallthru
      _
    // Predicated region
    $region26: #{tpu_custom_call.1} parent=1 // pred_check
      _
    $region27: #{tpu_custom_call.1} parent=1 // pred_check_branch
      %82 = sbr.rel (0) target = $region29
    $region28: #{tpu_custom_call.1} parent=1 // pred_region
      %84 = dma.done [#allocation6], 384
    $region29: #{tpu_custom_call.1} parent=1 // pred_fallthru
      _
    // Predicated region
    $region30: #{tpu_custom_call.1} parent=1 // pred_check
      _
    $region31: #{tpu_custom_call.1} parent=1 // pred_check_branch
      %86 = sbr.rel (0) target = $region33
    $region32: #{tpu_custom_call.1} parent=1 // pred_region
      %88 = dma.done [#allocation6], 1024
    $region33: #{tpu_custom_call.1} parent=1 // pred_fallthru
      _
    // Predicated region
    $region34: #{tpu_custom_call.1} parent=1 // pred_check
      _
    $region35: #{tpu_custom_call.1} parent=1 // pred_check_branch
      %90 = sbr.rel (0) target = $region37
    $region36: #{tpu_custom_call.1} parent=1 // pred_region
      %92 = dma.done [#allocation9], 384
    $region37: #{tpu_custom_call.1} parent=1 // pred_fallthru
      _
    // Predicated region
    $region38: #{tpu_custom_call.1} parent=1 // pred_check
      _
    $region39: #{tpu_custom_call.1} parent=1 // pred_check_branch
      %94 = sbr.rel (0) target = $region41
    $region40: #{tpu_custom_call.1} parent=1 // pred_region
      %96 = dma.done [#allocation9], 256
    $region41: #{tpu_custom_call.1} parent=1 // pred_fallthru
      _
    %v97 = vld [vmem:[#allocation2] sm:$0xff]
    %v98 = vld [vmem:[#allocation10] sm:$0xff]
    %v99 = vld [vmem:[#allocation10 + $0x8] sm:$0xff]
    %v100 = vld [vmem:[#allocation5] sm:$0xff]
    %v101 = vld [vmem:[#allocation5 + $0x8] sm:$0xff]
    %v102 = vld [vmem:[#allocation5 + $0x10] sm:$0xf]
    %v103 = vperm.slane %v98, 0
    %vm104 = vcmask 162816
    %v106 = vsel %vm104, %v97, 0
    %vm108 = vcmask 1043456
    %v110 = vsel %vm108, %v102, 0
    %112 = vmatpush.msra.mxu0 0.0
    %113 = vmatpush.msra.mxu0 0.0
    %114 = vmatpush.msra.mxu0 0.0
    %115 = vmatpush.msra.mxu0 0.0
    %116 = vmatpush.msra.mxu0 0.0
    %117 = vmatpush.msra.mxu0 0.0
    %118 = vmatpush.msra.mxu0 0.0
    %119 = vmatpush.msra.mxu0 0.0
    %120 = vmatpush.msra.mxu0 0.0
    %121 = vmatpush.msra.mxu0 0.0
    %122 = vmatpush.msra.mxu0 0.0
    %123 = vmatpush.msra.mxu0 0.0
    %124 = vmatpush.msra.mxu0 0.0
    %125 = vmatpush.msra.mxu0 %v110
    %126 = vmatpush.msra.mxu0 %v101
    %127 = vmatpush.msra.mxu0 %v100
    %128 = vmatmul.f32.gmra.mxu0 %v106
    %v129 = vpop.f32.mrf.mxu0
    %v130 = vadd.f32 %v103, %v129
    %131 = vdwg.mxu0
    %vm132 = vcmask 523264
    %v133 = vsel %vm132, %v130, 0.0
    %134 = vadd.xlane.f32.xlu0 %v133
    %v135 = vpop.xlane.xlu0 %134
    %v136 = vrcp.pop 64.0
    %v137 = vmul.f32 64.0, %v136
    %v138 = vsub.f32 1.0, %v137
    %v139 = vmul.f32 %v136, %v138
    %v140 = vadd.f32 %v136, %v139
    %vm141 = vweird.f32 %v136
    %v142 = vsel %vm141, %v136, %v140
    %v143 = vmul.f32 %v135, %v142
    %v144 = vsub.f32 %v130, %v143
    %v145 = vmul.f32 %v144, %v144
    %v146 = vsel %vm132, %v145, 0.0
    %147 = vadd.xlane.f32.xlu0 %v146
    %v148 = vpop.xlane.xlu0 %147
    %v149 = vmul.f32 %v148, %v142
    %v150 = vadd.f32 %v149, 1e-05
    %v151 = vrsqrt.pop %v150
    %v152 = vmul.f32 %v151, %v150
    %v153 = vmul.f32 %v152, %v151
    %v154 = vmul.f32 0.5, %v153
    %v155 = vsub.f32 1.5, %v154
    %v156 = vmul.f32 %v151, %v155
    %vm157 = vweird.f32 %v150
    %vm158 = vweird.f32 %v151
    %vm159 = vmor %vm157, %vm158
    %v160 = vsel %vm159, %v151, %v156
    %v161 = vmul.f32 %v144, %v160
    %v162 = vperm.slane %v98, 1
    %v163 = vmul.f32 %v161, %v162
    %v164 = vperm.slane %v98, 2
    %v165 = vadd.f32 %v163, %v164
    %v166 = vmax.f32 %v165, 0.0
    %v167 = vld [vmem:[#allocation7] sm:$0xff]
    %v168 = vld [vmem:[#allocation7 + $0x8] sm:$0xff]
    %v169 = vld [vmem:[#allocation7 + $0x10] sm:$0xff]
    %v170 = vld [vmem:[#allocation7 + $0x18] sm:$0xff]
    %v171 = vld [vmem:[#allocation7 + $0x20] sm:$0xff]
    %v172 = vld [vmem:[#allocation7 + $0x28] sm:$0xff]
    %v173 = vld [vmem:[#allocation7 + $0x30] sm:$0xff]
    %v174 = vld [vmem:[#allocation7 + $0x38] sm:$0xff]
    %v175 = vld [vmem:[#allocation8] sm:$0xff]
    %v176 = vld [vmem:[#allocation8 + $0x8] sm:$0xff]
    %v177 = vld [vmem:[#allocation8 + $0x10] sm:$0xf]
    %v179 = vsel %vm108, %v177, 0
    %181 = vmatpush.msra.mxu0 0.0
    %182 = vmatpush.msra.mxu0 0.0
    %183 = vmatpush.msra.mxu0 0.0
    %184 = vmatpush.msra.mxu0 0.0
    %185 = vmatpush.msra.mxu0 0.0
    %186 = vmatpush.msra.mxu0 0.0
    %187 = vmatpush.msra.mxu0 0.0
    %188 = vmatpush.msra.mxu0 0.0
    %189 = vmatpush.msra.mxu0 0.0
    %190 = vmatpush.msra.mxu0 0.0
    %191 = vmatpush.msra.mxu0 0.0
    %192 = vmatpush.msra.mxu0 0.0
    %193 = vmatpush.msra.mxu0 0.0
    %194 = vmatpush.msra.mxu0 %v179
    %195 = vmatpush.msra.mxu0 %v176
    %196 = vmatpush.msra.mxu0 %v175
    %197 = vmatmul.f32.gmra.mxu0 %v106
    %v198 = vpop.f32.mrf.mxu0
    %v199 = vadd.f32 0.0, %v198
    %200 = vdwg.mxu0
    %v202 = vsel %vm132, %v166, 0
    %204 = vmatpush.msra.mxu0 0.0
    %205 = vmatpush.msra.mxu0 0.0
    %206 = vmatpush.msra.mxu0 0.0
    %207 = vmatpush.msra.mxu0 0.0
    %208 = vmatpush.msra.mxu0 0.0
    %209 = vmatpush.msra.mxu0 0.0
    %210 = vmatpush.msra.mxu0 0.0
    %211 = vmatpush.msra.mxu0 0.0
    %212 = vmatpush.msra.mxu0 %v174
    %213 = vmatpush.msra.mxu0 %v173
    %214 = vmatpush.msra.mxu0 %v172
    %215 = vmatpush.msra.mxu0 %v171
    %216 = vmatpush.msra.mxu0 %v170
    %217 = vmatpush.msra.mxu0 %v169
    %218 = vmatpush.msra.mxu0 %v168
    %219 = vmatpush.msra.mxu0 %v167
    %220 = vmatmul.f32.gmra.mxu0 %v202
    %v221 = vpop.f32.mrf.mxu0
    %v222 = vadd.f32 %v199, %v221
    %223 = vdwg.mxu0
    %v224 = vperm.slane %v98, 3
    %v225 = vadd.f32 %v222, %v224
    %v226 = vsel %vm132, %v225, 0.0
    %227 = vadd.xlane.f32.xlu0 %v226
    %v228 = vpop.xlane.xlu0 %227
    %v229 = vmul.f32 %v228, %v142
    %v230 = vsub.f32 %v225, %v229
    %v231 = vmul.f32 %v230, %v230
    %v232 = vsel %vm132, %v231, 0.0
    %233 = vadd.xlane.f32.xlu0 %v232
    %v234 = vpop.xlane.xlu0 %233
    %v235 = vmul.f32 %v234, %v142
    %v236 = vadd.f32 %v235, 1e-05
    %v237 = vrsqrt.pop %v236
    %v238 = vmul.f32 %v237, %v236
    %v239 = vmul.f32 %v238, %v237
    %v240 = vmul.f32 0.5, %v239
    %v241 = vsub.f32 1.5, %v240
    %v242 = vmul.f32 %v237, %v241
    %vm243 = vweird.f32 %v236
    %vm244 = vweird.f32 %v237
    %vm245 = vmor %vm243, %vm244
    %v246 = vsel %vm245, %v237, %v242
    %v247 = vmul.f32 %v230, %v246
    %v248 = vperm.slane %v98, 4
    %v249 = vmul.f32 %v247, %v248
    %v250 = vperm.slane %v98, 5
    %v251 = vadd.f32 %v249, %v250
    %v252 = vmax.f32 %v251, 0.0
    %v254 = vsel %vm132, %v99, 0
    %v257 = vsel %vm132, %v252, 0
    %259 = vmatpush.xpose.msra.mxu0 0.0
    %260 = vmatpush.xpose.msra.mxu0 0.0
    %261 = vmatpush.xpose.msra.mxu0 0.0
    %262 = vmatpush.xpose.msra.mxu0 0.0
    %263 = vmatpush.xpose.msra.mxu0 0.0
    %264 = vmatpush.xpose.msra.mxu0 0.0
    %265 = vmatpush.xpose.msra.mxu0 0.0
    %266 = vmatpush.xpose.msra.mxu0 0.0
    %267 = vmatpush.xpose.msra.mxu0 0.0
    %268 = vmatpush.xpose.msra.mxu0 0.0
    %269 = vmatpush.xpose.msra.mxu0 0.0
    %270 = vmatpush.xpose.msra.mxu0 0.0
    %271 = vmatpush.xpose.msra.mxu0 0.0
    %272 = vmatpush.xpose.msra.mxu0 0.0
    %273 = vmatpush.xpose.msra.mxu0 0.0
    %274 = vmatpush.xpose.msra.mxu0 %v257
    %275 = vmatmul.f32.gmra.mxu0 %v254
    %v276 = vpop.f32.mrf.mxu0
    %v277 = vadd.f32 0.0, %v276
    %278 = vdwg.mxu0
    %280 = vset.pattern.permute.xlu0 0
    %281 = vperm.xlu0 %280, %v98
    %v282 = vpop.permute.xlu0 %281
    %v283 = vrot.slane %v282, 6
    %v285 = vadd.f32 %v277, %v283
    %vm286 = vcmask 57344
    %287 = vst.msk [vmem:[#allocation11] sm:$0x1] %vm286, %v285
    // Predicated region
    $region42: #{tpu_custom_call.1} parent=1 // pred_check
      _
    $region43: #{tpu_custom_call.1} parent=1 // pred_check_branch
      %289 = sbr.rel (0) target = $region45
    $region44: #{tpu_custom_call.1} parent=1 // pred_region
      %291 = vsyncadd [#allocation4], 0
      %s293 = sshll.u32 [#allocation11], 4
      %s294 = int_to_ptr.vmem [resolvable:$true] %s293
      %s295 = sshll.u32 %s5, 4
      %s296 = int_to_ptr.hbm [resolvable:$true] %s295
      %298 = dma.vmem_to_hbm [thread:$0]  %s294, 16, %s296, [#allocation4]
    $region45: #{tpu_custom_call.1} parent=1 // pred_fallthru
      _
    // Predicated region
    $region46: #{tpu_custom_call.1} parent=1 // pred_check
      _
    $region47: #{tpu_custom_call.1} parent=1 // pred_check_branch
      %300 = sbr.rel (0) target = $region49
    $region48: #{tpu_custom_call.1} parent=1 // pred_region
      %302 = dma.done [#allocation4], 16
    $region49: #{tpu_custom_call.1} parent=1 // pred_fallthru
      _
    %303 = vsyncpa [#allocation3], 1
    %304 = vsyncpa [#allocation6], 1
    %305 = vsyncpa [#allocation9], 1
    %306 = vsyncpa [#allocation4], 1

</llo_original>
